<compile_context>
chip_gen: v6e
topology: v6e:2x2x1
jax: 0.10.0
libtpu: 0.0.40
codegen_flags: <defaults>
</compile_context>

<pallas_src>
import functools

import jax
import jax.numpy as jnp
from jax import lax
from jax.experimental import pallas as pl
from jax.experimental.pallas import tpu as pltpu


def _conv_kernel(x_ref, w_ref, b_ref, raw_ref):
    """Train path: just the 1x1 conv on one (ch, TILE) slab.

    x:(1,ch,TILE) f32, w:(no,ch) f32, b:(no,1) f32 -> raw:(1,no,TILE) f32.
    """
    xb = x_ref[0].astype(jnp.bfloat16)          # in-kernel cast (VPU), no HBM cost
    wb = w_ref[...].astype(jnp.bfloat16)
    s = jnp.dot(wb, xb, preferred_element_type=jnp.float32)     # (no, TILE) on MXU
    raw_ref[0] = s + b_ref[...]


def _decode_kernel(boxes_ref,            # SMEM (bs, 4) scalar-prefetch
                   x_ref,                # VMEM (1, ch, TILE) f32
                   w_ref,                # VMEM (no, ch) f32
                   b_ref,                # VMEM (no, 1) f32
                   dec_ref,              # VMEM (1, no, TILE) f32 -> decoded boxes
                   *, ny, nx, tile):
    i = pl.program_id(0)                 # batch index
    t = pl.program_id(1)                 # HW tile index

    # ---- 1x1 conv == (no, ch) @ (ch, TILE) matmul (bf16 MXU, f32 acc) ----
    xb = x_ref[0].astype(jnp.bfloat16)
    wb = w_ref[...].astype(jnp.bfloat16)
    s = jnp.dot(wb, xb, preferred_element_type=jnp.float32)     # (no, TILE)
    s = s + b_ref[...]

    # ---- exact sigmoid (memory-bound kernel; exact divide is free) ----
    y = 1.0 / (1.0 + jnp.exp(-s))

    bx0 = boxes_ref[i, 0]
    by0 = boxes_ref[i, 1]
    bw = boxes_ref[i, 2] - bx0
    bh = boxes_ref[i, 3] - by0

    no_, TILE = s.shape
    row = lax.broadcasted_iota(jnp.int32, (no_, 1), 0)           # output channel
    col = lax.broadcasted_iota(jnp.int32, (1, TILE), 1) + t * tile  # global hw idx
    col_f = col.astype(jnp.float32)
    # gy = col // nx, gx = col % nx via float reciprocal-multiply (+0.5 makes the
    # floor robust to rounding for any realistic feature-map size).
    gy = jnp.floor((col_f + 0.5) * (1.0 / nx))
    gx = col_f - gy * float(nx)

    # Per-output-channel scale / offset ((no,1), broadcast along lanes).
    # torch: y[...,0] scaled by bw / y.shape[1] (== ny), y[...,1] by bh / nx.
    scale = jnp.where(row == 0, bw / float(ny),
            jnp.where(row == 1, bh / float(nx),
            jnp.where(row == 2, bw,
            jnp.where(row == 3, bh, 1.0))))
    offset = jnp.where(row == 0, bx0, jnp.where(row == 1, by0, 0.0))
    grid_term = jnp.where(row == 0, gx, 0.0) + jnp.where(row == 1, gy, 0.0)

    base = jnp.where(row < 2, y * 2.0 - 0.5 + grid_term, y)
    dec_ref[0] = base * scale + offset


def _pick_hw_tile(HW, ch, max_x_tile_bytes=8 << 20):
    """Largest multiple of 128 dividing HW whose double-buffered f32 x tile
    stays under max_x_tile_bytes (safe for v5e's 16 MiB scoped default and
    v7x's 64 MiB physical VMEM)."""
    if HW % 128 != 0:
        # Single full-extent block is always layout-legal.
        # TODO(synk): pad HW to a 128 multiple when such maps get very large.
        return HW
    cap = (max_x_tile_bytes // (2 * 4 * ch)) // 128 * 128
    cap = max(128, min(8192, cap))
    if HW <= cap:
        return HW
    for cand in range(cap, 127, -128):
        if HW % cand == 0:
            return cand
    return HW


def refine_head_forward(x_nchw, boxes, weight, bias, *, train=True,
                        channels_last_output=True, hw_tile=None):
    """Pallas implementation of refine_head.forward.

    x_nchw : (bs, ch, ny, nx) float32   (PyTorch NCHW conv input)
    boxes  : (bs, 4) float32            (== boxes[0] of the torch call, [x0,y0,x1,y1])
    weight : (no, ch, 1, 1) float32     (Conv2d weight)
    bias   : (no,) float32
    train=True  -> [x.permute(0,2,3,1)]            (or [(bs,no,ny,nx)] if
                   channels_last_output=False — lets the caller skip the
                   post-kernel HBM transpose)
    train=False -> decoded (bs, ny*nx, no)          (or (bs, no, ny*nx))
    The torch eval=True branch is the same decode with concatenated boxes.
    """
    bs, ch, ny, nx = x_nchw.shape
    no = weight.shape[0]
    HW = ny * nx

    tile = hw_tile if hw_tile is not None else _pick_hw_tile(HW, ch)
    assert HW % tile == 0 and (tile % 128 == 0 or tile == HW), (HW, tile)
    n_tiles = HW // tile

    # NCHW is already channels-major per batch: (bs, ch, HW) is a free reshape.
    # x stays f32 in HBM; the bf16 cast happens inside the kernel.
    x_flat = x_nchw.reshape(bs, ch, HW)
    w = weight.reshape(no, ch).astype(jnp.float32)      # (no, ch), tiny
    b = bias.reshape(no, 1).astype(jnp.float32)         # (no, 1)

    compiler_params = pltpu.CompilerParams(
        dimension_semantics=("parallel", "parallel"))

    if train:
        raw = pl.pallas_call(
            _conv_kernel,
            out_shape=jax.ShapeDtypeStruct((bs, no, HW), jnp.float32),
            grid_spec=pltpu.PrefetchScalarGridSpec(
                num_scalar_prefetch=0,
                grid=(bs, n_tiles),
                in_specs=[
                    pl.BlockSpec((1, ch, tile), lambda i, t: (i, 0, t)),
                    pl.BlockSpec((no, ch), lambda i, t: (0, 0)),   # resident
                    pl.BlockSpec((no, 1), lambda i, t: (0, 0)),    # resident
                ],
                out_specs=pl.BlockSpec((1, no, tile), lambda i, t: (i, 0, t)),
            ),
            compiler_params=compiler_params,
        )(x_flat, w, b)
        if not channels_last_output:
            return [raw.reshape(bs, no, ny, nx)]
        # (bs, no, HW) -> (bs, ny, nx, no)  == x.permute(0, 2, 3, 1)
        return [jnp.transpose(raw, (0, 2, 1)).reshape(bs, ny, nx, no)]

    boxes = boxes.astype(jnp.float32)
    kernel = functools.partial(_decode_kernel, ny=ny, nx=nx, tile=tile)
    dec = pl.pallas_call(
        kernel,
        out_shape=jax.ShapeDtypeStruct((bs, no, HW), jnp.float32),
        grid_spec=pltpu.PrefetchScalarGridSpec(
            num_scalar_prefetch=1,
            grid=(bs, n_tiles),
            in_specs=[
                pl.BlockSpec((1, ch, tile), lambda i, t, bxs: (i, 0, t)),
                pl.BlockSpec((no, ch), lambda i, t, bxs: (0, 0)),  # resident
                pl.BlockSpec((no, 1), lambda i, t, bxs: (0, 0)),   # resident
            ],
            out_specs=pl.BlockSpec((1, no, tile), lambda i, t, bxs: (i, 0, t)),
        ),
        compiler_params=compiler_params,
    )(boxes, x_flat, w, b)
    if not channels_last_output:
        return dec
    # (bs, no, HW) -> (bs, HW, no)
    return jnp.transpose(dec, (0, 2, 1))


def _reference(x_nchw, boxes, weight, bias, train):
    """Pure-JAX f32 reference reproducing the PyTorch semantics."""
    bs, ch, ny, nx = x_nchw.shape
    no = weight.shape[0]
    xp = jnp.einsum("bchw,oc->bhwo", x_nchw, weight.reshape(no, ch)) + bias
    if train:
        return [xp]
    y = jax.nn.sigmoid(xp)
    yv, xv = jnp.meshgrid(jnp.arange(ny), jnp.arange(nx), indexing="ij")
    bw = (boxes[:, 2] - boxes[:, 0]).reshape(-1, 1, 1)
    bh = (boxes[:, 3] - boxes[:, 1]).reshape(-1, 1, 1)
    c0 = (y[..., 0] * 2.0 - 0.5 + xv) * bw / ny + boxes[:, 0].reshape(-1, 1, 1)
    c1 = (y[..., 1] * 2.0 - 0.5 + yv) * bh / nx + boxes[:, 1].reshape(-1, 1, 1)
    c2 = y[..., 2] * bw
    c3 = y[..., 3] * bh
    out = jnp.concatenate(
        [c0[..., None], c1[..., None], c2[..., None], c3[..., None], y[..., 4:]],
        axis=-1)
    return out.reshape(bs, -1, no)


if __name__ == "__main__":
    # Small synthetic config: nc=1 -> no=6, ch=64, 16x16 feature map, batch 2.
    nc, ch, ny, nx, bs = 1, 64, 16, 16, 2
    no = 5 + nc

    key = jax.random.PRNGKey(0)
    kx, kw, kb, kbx = jax.random.split(key, 4)

    x = jax.random.normal(kx, (bs, ch, ny, nx), dtype=jnp.float32)
    weight = 0.05 * jax.random.normal(kw, (no, ch, 1, 1), dtype=jnp.float32)
    bias = 0.1 * jax.random.normal(kb, (no,), dtype=jnp.float32)

    # boxes[0] from the torch call: (bs, 4) with x1 > x0, y1 > y0
    xy0 = jax.random.uniform(kbx, (bs, 2), minval=0.0, maxval=100.0)
    wh = jax.random.uniform(jax.random.fold_in(kbx, 1), (bs, 2),
                            minval=20.0, maxval=80.0)
    boxes = jnp.concatenate([xy0, xy0 + wh], axis=-1).astype(jnp.float32)

    # Inference path, forcing 2 HW tiles (exercises the tiled iota offset).
    dec_tiled = refine_head_forward(x, boxes, weight, bias,
                                    train=False, hw_tile=128)
    dec_tiled = jax.block_until_ready(dec_tiled)

    # Inference path with the auto tile (single 256-lane tile here).
    dec_auto = refine_head_forward(x, boxes, weight, bias, train=False)
    dec_auto = jax.block_until_ready(dec_auto)

    # Train path, also tiled: [x.permute(0, 2, 3, 1)]
    raw = refine_head_forward(x, boxes, weight, bias, train=True, hw_tile=128)[0]
    raw = jax.block_until_ready(raw)

    dec_ref = _reference(x, boxes, weight, bias, train=False)
    raw_ref = _reference(x, boxes, weight, bias, train=True)[0]

    assert dec_tiled.shape == (bs, ny * nx, no)
    assert dec_auto.shape == (bs, ny * nx, no)
    assert raw.shape == (bs, ny, nx, no)
    # Tolerances account for the deliberate in-kernel bf16 MXU inputs
    # (sigmoid / decode math is exact f32 now).
    assert jnp.allclose(raw, raw_ref, rtol=2e-2, atol=5e-2)
    assert jnp.allclose(dec_tiled, dec_ref, rtol=2e-2, atol=5e-2)
    assert jnp.allclose(dec_auto, dec_ref, rtol=2e-2, atol=5e-2)

    print("KERNEL_OK")
</pallas_src>

<mosaic_0001>
module attributes {stable_mosaic.version = 11 : i64} {
  func.func @_decode_kernel(%arg0: i32, %arg1: i32, %arg2: memref<2x4xf32, #tpu.memory_space<smem>>, %arg3: memref<1x64x128xf32, #tpu.memory_space<vmem>>, %arg4: memref<6x64xf32, #tpu.memory_space<vmem>>, %arg5: memref<6x1xf32, #tpu.memory_space<vmem>>, %arg6: memref<1x6x128xf32, #tpu.memory_space<vmem>>) attributes {dimension_semantics = [#tpu.dimension_semantics<parallel>, #tpu.dimension_semantics<parallel>], iteration_bounds = array<i64: 2, 2>, scalar_prefetch = 1 : i64, scratch_operands = 0 : i64, tpu.core_type = #tpu.core_type<tc>, window_params = [{transform_indices = @transform_0, window_bounds = array<i64: 1, 64, 128>}, {pipeline_mode = #tpu.pipeline_mode<synchronous>, transform_indices = @transform_1, window_bounds = array<i64: 6, 64>}, {pipeline_mode = #tpu.pipeline_mode<synchronous>, transform_indices = @transform_2, window_bounds = array<i64: 6, 1>}, {transform_indices = @transform_3, window_bounds = array<i64: 1, 6, 128>}]} {
    %c0 = arith.constant 0 : index
    %c0_0 = arith.constant 0 : index
    %c0_1 = arith.constant 0 : index
    %0 = vector.load %arg3[%c0, %c0_0, %c0_1] : memref<1x64x128xf32, #tpu.memory_space<vmem>>, vector<1x64x128xf32>
    %1 = vector.shape_cast %0 : vector<1x64x128xf32> to vector<64x128xf32>
    %2 = arith.truncf %1 : vector<64x128xf32> to vector<64x128xbf16>
    %c0_2 = arith.constant 0 : index
    %c0_3 = arith.constant 0 : index
    %3 = vector.load %arg4[%c0_2, %c0_3] : memref<6x64xf32, #tpu.memory_space<vmem>>, vector<6x64xf32>
    %4 = arith.truncf %3 : vector<6x64xf32> to vector<6x64xbf16>
    %cst = arith.constant dense<0.000000e+00> : vector<6x128xf32>
    %5 = tpu.matmul %4, %2, %cst {dimension_numbers = #tpu.dot_dimension_numbers<[1], [0], [0], [1], [0, 0, 1, 1], [], []>} : vector<6x64xbf16>, vector<64x128xbf16>, vector<6x128xf32> -> vector<6x128xf32>
    %c0_4 = arith.constant 0 : index
    %c0_5 = arith.constant 0 : index
    %6 = vector.load %arg5[%c0_4, %c0_5] : memref<6x1xf32, #tpu.memory_space<vmem>>, vector<6x1xf32>
    %7 = vector.broadcast %6 : vector<6x1xf32> to vector<6x128xf32>
    %8 = arith.addf %5, %7 : vector<6x128xf32>
    %cst_6 = arith.constant 0.000000e+00 : f32
    %9 = vector.broadcast %cst_6 : f32 to vector<6x128xf32>
    %10 = arith.subf %9, %8 : vector<6x128xf32>
    %11 = math.exp %10 : vector<6x128xf32>
    %cst_7 = arith.constant 1.000000e+00 : f32
    %12 = vector.broadcast %cst_7 : f32 to vector<6x128xf32>
    %13 = arith.addf %12, %11 : vector<6x128xf32>
    %cst_8 = arith.constant 1.000000e+00 : f32
    %14 = vector.broadcast %cst_8 : f32 to vector<6x128xf32>
    %15 = arith.divf %14, %13 : vector<6x128xf32>
    %16 = arith.index_cast %arg0 : i32 to index
    %c0_9 = arith.constant 0 : index
    %17 = memref.load %arg2[%16, %c0_9] : memref<2x4xf32, #tpu.memory_space<smem>>
    %18 = arith.index_cast %arg0 : i32 to index
    %c1 = arith.constant 1 : index
    %19 = memref.load %arg2[%18, %c1] : memref<2x4xf32, #tpu.memory_space<smem>>
    %20 = arith.index_cast %arg0 : i32 to index
    %c2 = arith.constant 2 : index
    %21 = memref.load %arg2[%20, %c2] : memref<2x4xf32, #tpu.memory_space<smem>>
    %22 = arith.subf %21, %17 : f32
    %23 = arith.index_cast %arg0 : i32 to index
    %c3 = arith.constant 3 : index
    %24 = memref.load %arg2[%23, %c3] : memref<2x4xf32, #tpu.memory_space<smem>>
    %25 = arith.subf %24, %19 : f32
    %26 = tpu.iota {dimensions = array<i32: 0>} : vector<6x1xi32>
    %27 = tpu.iota {dimensions = array<i32: 1>} : vector<1x128xi32>
    %c128_i32 = arith.constant 128 : i32
    %28 = arith.muli %arg1, %c128_i32 : i32
    %29 = vector.broadcast %28 : i32 to vector<1x128xi32>
    %30 = arith.addi %27, %29 : vector<1x128xi32>
    %31 = arith.sitofp %30 : vector<1x128xi32> to vector<1x128xf32>
    %cst_10 = arith.constant 5.000000e-01 : f32
    %32 = vector.broadcast %cst_10 : f32 to vector<1x128xf32>
    %33 = arith.addf %31, %32 : vector<1x128xf32>
    %cst_11 = arith.constant 6.250000e-02 : f32
    %34 = vector.broadcast %cst_11 : f32 to vector<1x128xf32>
    %35 = arith.mulf %33, %34 : vector<1x128xf32>
    %36 = math.floor %35 : vector<1x128xf32>
    %cst_12 = arith.constant 1.600000e+01 : f32
    %37 = vector.broadcast %cst_12 : f32 to vector<1x128xf32>
    %38 = arith.mulf %36, %37 : vector<1x128xf32>
    %39 = arith.subf %31, %38 : vector<1x128xf32>
    %c0_i32 = arith.constant 0 : i32
    %40 = vector.broadcast %c0_i32 : i32 to vector<6x1xi32>
    %41 = arith.cmpi eq, %26, %40 : vector<6x1xi32>
    %cst_13 = arith.constant 1.600000e+01 : f32
    %42 = arith.divf %22, %cst_13 : f32
    %c1_i32 = arith.constant 1 : i32
    %43 = vector.broadcast %c1_i32 : i32 to vector<6x1xi32>
    %44 = arith.cmpi eq, %26, %43 : vector<6x1xi32>
    %cst_14 = arith.constant 1.600000e+01 : f32
    %45 = arith.divf %25, %cst_14 : f32
    %c2_i32 = arith.constant 2 : i32
    %46 = vector.broadcast %c2_i32 : i32 to vector<6x1xi32>
    %47 = arith.cmpi eq, %26, %46 : vector<6x1xi32>
    %c3_i32 = arith.constant 3 : i32
    %48 = vector.broadcast %c3_i32 : i32 to vector<6x1xi32>
    %49 = arith.cmpi eq, %26, %48 : vector<6x1xi32>
    %cst_15 = arith.constant 1.000000e+00 : f32
    %50 = vector.broadcast %25 : f32 to vector<6x1xf32>
    %51 = vector.broadcast %cst_15 : f32 to vector<6x1xf32>
    %52 = arith.select %49, %50, %51 : vector<6x1xi1>, vector<6x1xf32>
    %53 = vector.broadcast %22 : f32 to vector<6x1xf32>
    %54 = arith.select %47, %53, %52 : vector<6x1xi1>, vector<6x1xf32>
    %55 = vector.broadcast %45 : f32 to vector<6x1xf32>
    %56 = arith.select %44, %55, %54 : vector<6x1xi1>, vector<6x1xf32>
    %57 = vector.broadcast %42 : f32 to vector<6x1xf32>
    %58 = arith.select %41, %57, %56 : vector<6x1xi1>, vector<6x1xf32>
    %c0_i32_16 = arith.constant 0 : i32
    %59 = vector.broadcast %c0_i32_16 : i32 to vector<6x1xi32>
    %60 = arith.cmpi eq, %26, %59 : vector<6x1xi32>
    %c1_i32_17 = arith.constant 1 : i32
    %61 = vector.broadcast %c1_i32_17 : i32 to vector<6x1xi32>
    %62 = arith.cmpi eq, %26, %61 : vector<6x1xi32>
    %cst_18 = arith.constant 0.000000e+00 : f32
    %63 = vector.broadcast %19 : f32 to vector<6x1xf32>
    %64 = vector.broadcast %cst_18 : f32 to vector<6x1xf32>
    %65 = arith.select %62, %63, %64 : vector<6x1xi1>, vector<6x1xf32>
    %66 = vector.broadcast %17 : f32 to vector<6x1xf32>
    %67 = arith.select %60, %66, %65 : vector<6x1xi1>, vector<6x1xf32>
    %c0_i32_19 = arith.constant 0 : i32
    %68 = vector.broadcast %c0_i32_19 : i32 to vector<6x1xi32>
    %69 = arith.cmpi eq, %26, %68 : vector<6x1xi32>
    %cst_20 = arith.constant 0.000000e+00 : f32
    %70 = vector.shape_cast %69 : vector<6x1xi1> to vector<6x1xi1>
    %71 = vector.broadcast %70 : vector<6x1xi1> to vector<6x128xi1>
    %72 = vector.shape_cast %39 : vector<1x128xf32> to vector<1x128xf32>
    %73 = vector.broadcast %72 : vector<1x128xf32> to vector<6x128xf32>
    %74 = vector.broadcast %cst_20 : f32 to vector<6x128xf32>
    %75 = arith.select %71, %73, %74 : vector<6x128xi1>, vector<6x128xf32>
    %c1_i32_21 = arith.constant 1 : i32
    %76 = vector.broadcast %c1_i32_21 : i32 to vector<6x1xi32>
    %77 = arith.cmpi eq, %26, %76 : vector<6x1xi32>
    %cst_22 = arith.constant 0.000000e+00 : f32
    %78 = vector.shape_cast %77 : vector<6x1xi1> to vector<6x1xi1>
    %79 = vector.broadcast %78 : vector<6x1xi1> to vector<6x128xi1>
    %80 = vector.shape_cast %36 : vector<1x128xf32> to vector<1x128xf32>
    %81 = vector.broadcast %80 : vector<1x128xf32> to vector<6x128xf32>
    %82 = vector.broadcast %cst_22 : f32 to vector<6x128xf32>
    %83 = arith.select %79, %81, %82 : vector<6x128xi1>, vector<6x128xf32>
    %84 = arith.addf %75, %83 : vector<6x128xf32>
    %c2_i32_23 = arith.constant 2 : i32
    %85 = vector.broadcast %c2_i32_23 : i32 to vector<6x1xi32>
    %86 = arith.cmpi slt, %26, %85 : vector<6x1xi32>
    %cst_24 = arith.constant 2.000000e+00 : f32
    %87 = vector.broadcast %cst_24 : f32 to vector<6x128xf32>
    %88 = arith.mulf %15, %87 : vector<6x128xf32>
    %cst_25 = arith.constant 5.000000e-01 : f32
    %89 = vector.broadcast %cst_25 : f32 to vector<6x128xf32>
    %90 = arith.subf %88, %89 : vector<6x128xf32>
    %91 = arith.addf %90, %84 : vector<6x128xf32>
    %92 = vector.shape_cast %86 : vector<6x1xi1> to vector<6x1xi1>
    %93 = vector.broadcast %92 : vector<6x1xi1> to vector<6x128xi1>
    %94 = arith.select %93, %91, %15 : vector<6x128xi1>, vector<6x128xf32>
    %95 = vector.broadcast %58 : vector<6x1xf32> to vector<6x128xf32>
    %96 = arith.mulf %94, %95 : vector<6x128xf32>
    %97 = vector.broadcast %67 : vector<6x1xf32> to vector<6x128xf32>
    %98 = arith.addf %96, %97 : vector<6x128xf32>
    %c0_26 = arith.constant 0 : index
    %c0_27 = arith.constant 0 : index
    %c0_28 = arith.constant 0 : index
    %99 = vector.load %arg6[%c0_26, %c0_27, %c0_28] : memref<1x6x128xf32, #tpu.memory_space<vmem>>, vector<1x6x128xf32>
    %100 = vector.shape_cast %99 : vector<1x6x128xf32> to vector<6x128xf32>
    %101 = vector.shape_cast %98 : vector<6x128xf32> to vector<1x6x128xf32>
    tpu.vector_store %arg6[%c0_26, %c0_27, %c0_28], %101 {strides = array<i32>} : memref<1x6x128xf32, #tpu.memory_space<vmem>>, vector<1x6x128xf32>,
    return
  }
  func.func @transform_0(%arg0: i32, %arg1: i32, %arg2: memref<2x4xf32, #tpu.memory_space<smem>>) -> (i32, i32, i32) {
    %c0_i32 = arith.constant 0 : i32
    %c0_i32_0 = arith.constant 0 : i32
    return %arg0, %c0_i32, %arg1 : i32, i32, i32
  }
  func.func @transform_1(%arg0: i32, %arg1: i32, %arg2: memref<2x4xf32, #tpu.memory_space<smem>>) -> (i32, i32) {
    %c0_i32 = arith.constant 0 : i32
    %c0_i32_0 = arith.constant 0 : i32
    %c0_i32_1 = arith.constant 0 : i32
    return %c0_i32, %c0_i32_0 : i32, i32
  }
  func.func @transform_2(%arg0: i32, %arg1: i32, %arg2: memref<2x4xf32, #tpu.memory_space<smem>>) -> (i32, i32) {
    %c0_i32 = arith.constant 0 : i32
    %c0_i32_0 = arith.constant 0 : i32
    %c0_i32_1 = arith.constant 0 : i32
    return %c0_i32, %c0_i32_0 : i32, i32
  }
  func.func @transform_3(%arg0: i32, %arg1: i32, %arg2: memref<2x4xf32, #tpu.memory_space<smem>>) -> (i32, i32, i32) {
    %c0_i32 = arith.constant 0 : i32
    %c0_i32_0 = arith.constant 0 : i32
    return %arg0, %c0_i32, %arg1 : i32, i32, i32
  }
}

</mosaic_0001>

<llo_original>
// kernel: tpu_custom_call.1
$region0: #{tpu_custom_call.1}
  #allocation0 [shape = 'u32[]', space=smem, size = 0x4, offset = 0x4, fixed_abs, tag = 'smem constant byte address 0x4 - core index']
  #allocation1 [shape = 'u32[144,128]{1,0:T(1,128)}', space=vmem, size = 0x12000, scoped, tag = 'internal scratch']
  #allocation2 [shape = 's32[1]{0}', space=sflag, size = 0x4, scoped, tag = 'scoped memory for tpu_custom_call.1']
  #allocation3 [shape = 'u8[1024]{0}', space=smem, size = 0x400, scoped, tag = 'prefetched SMEM operand 0']
  %s0 = inlined_call_operand.vmem [shape: f32[2,4], index: 0, kind: input, shape index: {}]
  %s1 = inlined_call_operand.hbm [shape: f32[2,64,256], index: 1, kind: input, shape index: {}]
  %s2 = inlined_call_operand.vmem [shape: f32[6,64], index: 2, kind: input, shape index: {}]
  %s3 = inlined_call_operand.vmem [shape: f32[6,1], index: 3, kind: input, shape index: {}]
  %s4 = inlined_call_operand.vmem [shape: f32[2,6,256], index: 4, kind: output, shape index: {}]
  %s5 = sld [smem:[#allocation0]]
  $region49: #{tpu_custom_call.1} parent=0
    _
  %s7 = ssub.s32 1, %s5
  %s8 = scalar_select 0, %s7, %s5
  %s9 = sshll.u32 %s0, 4
  %s10 = int_to_ptr.vmem [resolvable:$true] %s9
  %12 = dma.vmem_to_smem %s10, 32, [#allocation3], [#allocation2]
  %13 = dma.done [#allocation2], 32
  %14 = sfence
  $region1: #{tpu_custom_call.1} parent=0
    #allocation4 [shape = 'u8[65536]{0}', space=vmem, size = 0x10000, scoped, tag = 'input window, operand 1']
    #allocation5 [shape = 's32[2]{0}', space=sflag, size = 0x8, scoped, tag = 'scoped memory for tpu_custom_call.1']
    %15 = vsyncpa [#allocation5], 0
    %s16 = scalar_lea.sflag [#allocation5], 1
    %17 = vsyncpa %s16, 0
    loop: start=0, step=1, limit=6
    $region2: #{tpu_custom_call.1} parent=1 // loop_pre_header
      _
    $region3: #{tpu_custom_call.1} parent=1 // loop_header
      %s19 = sphi 0, %s23
      %p20 = scmp.ge.s32.totalorder %s19, 6
      %s26 = sphi 0, %s38
      %s27 = sphi 0, %s34
      %s28 = sphi 0, %s26
      %s29 = sphi 0, %s27
      %s30 = sphi 0, %s28
      %s31 = sphi 0, %s29
      %s43 = sphi 0, %s45
      %s46 = sphi 0, %s43
      %s47 = sphi 0, %s46
      %s63 = sphi 0, %s47
      %s67 = sphi 0, %s67
      %s69 = sphi 0, %s67
      %s70 = sphi 0, %s69
      %s84 = sphi 0, %s70
      %s88 = sphi 0, %s88
      %s90 = sphi 0, %s88
      %s91 = sphi 0, %s90
      %s105 = sphi 0, %s91
      %s113 = sphi 0, %s115
      %s116 = sphi 0, %s113
      %s117 = sphi 0, %s116
      %s133 = sphi 0, %s117
    $region4: #{tpu_custom_call.1} parent=1 // loop_header_branch
      %22 = sbr.rel (%p20) target = $region8
    $region5: #{tpu_custom_call.1} parent=1 // loop_body
      %s24 = ssub.s32 %s19, 1
      %s25 = ssub.s32 %s19, 2
      %s32 = sadd.s32 1, %s27
      %p33 = scmp.ge.s32.totalorder %s32, 2
      %s34 = scalar_select %p33, 0, %s32
      %s35 = sadd.s32 1, %s26
      %s36 = scalar_select %p33, %s35, %s26
      %p37 = scmp.ge.s32.totalorder %s36, 2
      %s38 = scalar_select %p37, 0, %s36
      %s39 = ssub.s32 %s26, %s38
      %s40 = ssub.s32 %s27, %s34
      %s41 = sor.u32 %s39, %s40
      %p42 = scmp.eq.s32.totalorder %s41, 0
      %s44 = sadd.s32 %s43, 1
      %s45 = scalar_select %p42, %s43, %s44
      %p48 = pneg %p42
      %p49 = scmp.eq.s32.totalorder %s19, 3
      %p50 = por %p48, %p49
      %p51 = scmp.ne.s32.totalorder %s43, %s46
      %p52 = scmp.eq.s32.totalorder %s19, 0
      %p53 = por %p51, %p52
      %p54 = scmp.ne.s32.totalorder %s43, %s46
      %p55 = scmp.eq.s32.totalorder %s24, 3
      %p56 = por %p54, %p55
      %p57 = scmp.ne.s32.totalorder %s46, %s47
      %p58 = scmp.eq.s32.totalorder %s24, 0
      %p59 = por %p57, %p58
      %p60 = scmp.ne.s32.totalorder %s46, %s47
      %p61 = scmp.eq.s32.totalorder %s25, 3
      %p62 = por %p60, %p61
      %p64 = scmp.ne.s32.totalorder %s47, %s63
      %p65 = scmp.eq.s32.totalorder %s25, 0
      %p66 = por %p64, %p65
      %s68 = sadd.s32 %s67, 1
      %p71 = scmp.eq.s32.totalorder %s19, 3
      %p72 = scmp.ne.s32.totalorder %s67, %s69
      %p73 = scmp.eq.s32.totalorder %s19, 0
      %p74 = por %p72, %p73
      %p75 = scmp.ne.s32.totalorder %s67, %s69
      %p76 = scmp.eq.s32.totalorder %s24, 3
      %p77 = por %p75, %p76
      %p78 = scmp.ne.s32.totalorder %s69, %s70
      %p79 = scmp.eq.s32.totalorder %s24, 0
      %p80 = por %p78, %p79
      %p81 = scmp.ne.s32.totalorder %s69, %s70
      %p82 = scmp.eq.s32.totalorder %s25, 3
      %p83 = por %p81, %p82
      %p85 = scmp.ne.s32.totalorder %s70, %s84
      %p86 = scmp.eq.s32.totalorder %s25, 0
      %p87 = por %p85, %p86
      %s89 = sadd.s32 %s88, 1
      %p92 = scmp.eq.s32.totalorder %s19, 3
      %p93 = scmp.ne.s32.totalorder %s88, %s90
      %p94 = scmp.eq.s32.totalorder %s19, 0
      %p95 = por %p93, %p94
      %p96 = scmp.ne.s32.totalorder %s88, %s90
      %p97 = scmp.eq.s32.totalorder %s24, 3
      %p98 = por %p96, %p97
      %p99 = scmp.ne.s32.totalorder %s90, %s91
      %p100 = scmp.eq.s32.totalorder %s24, 0
      %p101 = por %p99, %p100
      %p102 = scmp.ne.s32.totalorder %s90, %s91
      %p103 = scmp.eq.s32.totalorder %s25, 3
      %p104 = por %p102, %p103
      %p106 = scmp.ne.s32.totalorder %s91, %s105
      %p107 = scmp.eq.s32.totalorder %s25, 0
      %p108 = por %p106, %p107
      %s109 = ssub.s32 %s26, %s38
      %s110 = ssub.s32 %s27, %s34
      %s111 = sor.u32 %s109, %s110
      %p112 = scmp.eq.s32.totalorder %s111, 0
      %s114 = sadd.s32 %s113, 1
      %s115 = scalar_select %p112, %s113, %s114
      %p118 = pneg %p112
      %p119 = scmp.eq.s32.totalorder %s19, 3
      %p120 = por %p118, %p119
      %p121 = scmp.ne.s32.totalorder %s113, %s116
      %p122 = scmp.eq.s32.totalorder %s19, 0
      %p123 = por %p121, %p122
      %p124 = scmp.ne.s32.totalorder %s113, %s116
      %p125 = scmp.eq.s32.totalorder %s24, 3
      %p126 = por %p124, %p125
      %p127 = scmp.ne.s32.totalorder %s116, %s117
      %p128 = scmp.eq.s32.totalorder %s24, 0
      %p129 = por %p127, %p128
      %p130 = scmp.ne.s32.totalorder %s116, %s117
      %p131 = scmp.eq.s32.totalorder %s25, 3
      %p132 = por %p130, %p131
      %p134 = scmp.ne.s32.totalorder %s117, %s133
      %p135 = scmp.eq.s32.totalorder %s25, 0
      %p136 = por %p134, %p135
      %p137 = scmp.le.s32.totalorder 1, %s19
      %p138 = scmp.lt.s32.totalorder %s19, 5
      %p139 = pnand %p137, %p138
      %p140 = pneg %p139
      // Predicated region
      $region9: #{tpu_custom_call.1} parent=5 // pred_check
        _
      $region10: #{tpu_custom_call.1} parent=5 // pred_check_branch
        %142 = sbr.rel (%p139) target = $region12
      $region11: #{tpu_custom_call.1} parent=5 // pred_region
        %s143 = ssub.s32 %s19, 1
        // Predicated region
        $region13: #{tpu_custom_call.1} parent=11 // pred_check
          %p144 = pneg %p80
        $region14: #{tpu_custom_call.1} parent=11 // pred_check_branch
          %146 = sbr.rel (%p144) target = $region16
        $region15: #{tpu_custom_call.1} parent=11 // pred_region
          _
        $region16: #{tpu_custom_call.1} parent=11 // pred_fallthru
          _
        // Predicated region
        $region17: #{tpu_custom_call.1} parent=11 // pred_check
          %p147 = pneg %p101
        $region18: #{tpu_custom_call.1} parent=11 // pred_check_branch
          %149 = sbr.rel (%p147) target = $region20
        $region19: #{tpu_custom_call.1} parent=11 // pred_region
          _
        $region20: #{tpu_custom_call.1} parent=11 // pred_fallthru
          _
      $region12: #{tpu_custom_call.1} parent=5 // pred_fallthru
        _
      %p150 = scmp.lt.s32.totalorder %s19, 4
      // Predicated region
      $region21: #{tpu_custom_call.1} parent=5 // pred_check
        %p151 = pneg %p150
      $region22: #{tpu_custom_call.1} parent=5 // pred_check_branch
        %153 = sbr.rel (%p151) target = $region24
      $region23: #{tpu_custom_call.1} parent=5 // pred_region
        // Predicated region
        $region25: #{tpu_custom_call.1} parent=23 // pred_check
          %p154 = pneg %p53
        $region26: #{tpu_custom_call.1} parent=23 // pred_check_branch
          %156 = sbr.rel (%p154) target = $region28
        $region27: #{tpu_custom_call.1} parent=23 // pred_region
          %s157 = sand.u32 %s43, 1
          %s158 = scalar_lea.sflag [#allocation5], %s157
          %s159 = sand.u32 %s43, 1
          %s160 = smul.addr %s159, 64
          %s161 = scalar_lea.vmem [#allocation4], %s160
          %s163 = ssub.s32 1024, 1024
          %164 = vsyncadd %s158, %s163
          %s165 = smul.addr %s26, 16
          %s166 = sadd.s32 %s27, %s165
          %s167 = smul.addr %s166, 128
          %s168 = scalar_lea.hbm %s1, %s167
          %s169 = sshll.u32 %s161, 4
          %s170 = int_to_ptr.vmem [resolvable:$true] %s169
          %175 = dma.hbm_to_vmem [thread:$0]  %s168, 1024, %s170, %s158, 256, 128, 8
        $region28: #{tpu_custom_call.1} parent=23 // pred_fallthru
          _
      $region24: #{tpu_custom_call.1} parent=5 // pred_fallthru
        _
      %p176 = scmp.le.s32.totalorder 1, %s19
      %p177 = scmp.lt.s32.totalorder %s19, 5
      %p178 = pnand %p176, %p177
      %p179 = pneg %p178
      // Predicated region
      $region29: #{tpu_custom_call.1} parent=5 // pred_check
        _
      $region30: #{tpu_custom_call.1} parent=5 // pred_check_branch
        %181 = sbr.rel (%p178) target = $region32
      $region31: #{tpu_custom_call.1} parent=5 // pred_region
        %s182 = ssub.s32 %s19, 1
        %s183 = sand.u32 %s46, 1
        %s184 = scalar_lea.sflag [#allocation5], %s183
        %s185 = sand.u32 %s46, 1
        %s186 = smul.addr %s185, 64
        %s187 = scalar_lea.vmem [#allocation4], %s186
        // Predicated region
        $region33: #{tpu_custom_call.1} parent=31 // pred_check
          %p188 = pneg %p59
        $region34: #{tpu_custom_call.1} parent=31 // pred_check_branch
          %190 = sbr.rel (%p188) target = $region36
        $region35: #{tpu_custom_call.1} parent=31 // pred_region
          %191 = dma.done %s184, 1024
        $region36: #{tpu_custom_call.1} parent=31 // pred_fallthru
          _
        %s192 = sand.u32 %s46, 1
        %s193 = scalar_lea.sflag [#allocation5], %s192
        %s194 = sand.u32 %s46, 1
        %s195 = smul.addr %s194, 64
        %s196 = scalar_lea.vmem [#allocation4], %s195
        %p197 = pneg %p59
        %p198 = pneg %p56
        %p199 = pneg %p80
        %p200 = pneg %p77
        %p201 = pneg %p101
        %p202 = pneg %p98
        %p203 = pneg %p129
        %p204 = pneg %p126
        %p205 = scmp.lt.s32.totalorder %s28, 1
        %s206 = scalar_select %p205, %s28, 1
        %p207 = scmp.lt.s32.totalorder %s29, 1
        %s208 = scalar_select %p207, %s29, 1
        %s209 = smul.addr %s206, 2
        %s210 = sadd.s32 %s208, %s209
        %s211 = smul.addr %s210, 8
        %s212 = scalar_lea.vmem %s4, %s211
        %p213 = scmp.lt.s32.totalorder %s28, 1
        %s214 = scalar_select %p213, %s28, 1
        %p215 = scmp.lt.s32.totalorder %s29, 1
        %s216 = scalar_select %p215, %s29, 1
        %s217 = smul.addr %s214, 2
        %s218 = sadd.s32 %s216, %s217
        %s219 = smul.addr %s218, 8
        %s220 = scalar_lea.vmem %s4, %s219
        %v222 = vld [vmem:[%s187] sm:$0xff]
        %v223 = vld [vmem:[%s187 + $0x8] sm:$0xff]
        %v224 = vld [vmem:[%s187 + $0x10] sm:$0xff]
        %v225 = vld [vmem:[%s187 + $0x18] sm:$0xff]
        %v226 = vld [vmem:[%s187 + $0x20] sm:$0xff]
        %v227 = vld [vmem:[%s187 + $0x28] sm:$0xff]
        %v228 = vld [vmem:[%s187 + $0x30] sm:$0xff]
        %v229 = vld [vmem:[%s187 + $0x38] sm:$0xff]
        %v230 = vpack.c.bf16 %v223, %v222
        %v231 = vpack.c.bf16 %v225, %v224
        %v232 = vpack.c.bf16 %v227, %v226
        %v233 = vpack.c.bf16 %v229, %v228
        %v234 = vld [vmem:[%s2] sm:$0x3f]
        %v235 = vpack.c.bf16 %v234, %v234
        %v236 = vld [vmem:[%s3] sm:$0x3f]
        %238 = vset.pattern.permute.xlu0 0
        %239 = vperm.xlu0 %238, %v236
        %v240 = vpop.permute.xlu0 %239
        %vm242 = vcmask 523264
        %v244 = vsel %vm242, %v235, 0
        %246 = vmatprep.subr.bf16.mxu0 0
        %247 = vmatpush1.bf16.msra.mxu0 0
        %248 = vmatprep.subr.bf16.mxu0 0
        %249 = vmatpush1.bf16.msra.mxu0 0
        %250 = vmatprep.subr.bf16.mxu0 0
        %251 = vmatpush1.bf16.msra.mxu0 0
        %252 = vmatprep.subr.bf16.mxu0 0
        %253 = vmatpush1.bf16.msra.mxu0 0
        %254 = vmatprep.subr.bf16.mxu0 0
        %255 = vmatpush1.bf16.msra.mxu0 %v233
        %256 = vmatprep.subr.bf16.mxu0 0
        %257 = vmatpush1.bf16.msra.mxu0 %v232
        %258 = vmatprep.subr.bf16.mxu0 0
        %259 = vmatpush1.bf16.msra.mxu0 %v231
        %260 = vmatprep.subr.bf16.mxu0 0
        %261 = vmatpush1.bf16.msra.mxu0 %v230
        %262 = vmatprep.subr.bf16.mxu0 0
        %263 = vmatpush2.bf16.msra.mxu0 0
        %264 = vmatprep.subr.bf16.mxu0 0
        %265 = vmatpush2.bf16.msra.mxu0 0
        %266 = vmatprep.subr.bf16.mxu0 0
        %267 = vmatpush2.bf16.msra.mxu0 0
        %268 = vmatprep.subr.bf16.mxu0 0
        %269 = vmatpush2.bf16.msra.mxu0 0
        %270 = vmatprep.subr.bf16.mxu0 0
        %271 = vmatpush2.bf16.msra.mxu0 0
        %272 = vmatprep.subr.bf16.mxu0 0
        %273 = vmatpush2.bf16.msra.mxu0 0
        %274 = vmatprep.subr.bf16.mxu0 0
        %275 = vmatpush2.bf16.msra.mxu0 0
        %276 = vmatprep.subr.bf16.mxu0 0
        %277 = vmatpush2.bf16.msra.mxu0 0
        %278 = vmatprep.mubr.bf16.mxu0 0
        %279 = vmatmul.mubr.bf16.gmra.mxu0 %v244
        %v280 = vpop.f32.mrf.mxu0
        %v281 = vadd.f32 %v240, %v280
        %v282 = vpop.f32.mrf.mxu0
        %v283 = vpop.f32.mrf.mxu0
        %v284 = vpop.f32.mrf.mxu0
        %285 = vdwg.mxu0
        %v286 = vsub.f32 0.0, %v281
        %v287 = vmul.f32 %v286, 1.442695
        %v288 = vpow.pop %v287
        %v289 = vadd.f32 %v288, 1.0
        %v290 = vrcp.pop %v289
        %v291 = vmul.f32 1.0, %v290
        %s292 = smul.u32 %s28, 128
        %s293 = sld [smem:[#allocation3 + %s292]]
        %s294 = sadd.s32 %s292, 1
        %s295 = sld [smem:[#allocation3 + %s294]]
        %s296 = sadd.s32 %s292, 2
        %s297 = sld [smem:[#allocation3 + %s296]]
        %s298 = ssub.f32 %s297, %s293
        %s299 = sadd.s32 %s292, 3
        %s300 = sld [smem:[#allocation3 + %s299]]
        %s301 = ssub.f32 %s300, %s295
        %v302 = vlaneseq
        %v303 = vshrl.u32 %v302, 7
        %v304 = vlaneseq
        %v305 = vand.u32 %v304, 127
        %s306 = smul.u32 %s29, 128
        %v307 = vstv %s306
        %v308 = vadd.s32 %v305, %v307
        %v309 = vcvt.s32.f32 %v308
        %v310 = vadd.f32 %v309, 0.5
        %v311 = vmul.f32 %v310, 0.0625
        %v312 = vfloor.f32 %v311
        %v313 = vmul.f32 %v312, 16.0
        %v314 = vsub.f32 %v309, %v313
        %vm315 = vcmp.eq.s32.totalorder %v303, 0
        %v316 = vrcp.pop 16.0
        %s317 = vtos %v316
        %s318 = smul.f32 %s298, %s317
        %vm319 = vcmp.eq.s32.totalorder %v303, 1
        %v320 = vrcp.pop 16.0
        %s321 = vtos %v320
        %s322 = smul.f32 %s301, %s321
        %vm323 = vcmp.eq.s32.totalorder %v303, 2
        %vm324 = vcmp.eq.s32.totalorder %v303, 3
        %v325 = vstv %s301
        %v326 = vsel %vm324, %v325, 1.0
        %v327 = vstv %s298
        %v328 = vsel %vm323, %v327, %v326
        %v329 = vstv %s322
        %v330 = vsel %vm319, %v329, %v328
        %v331 = vstv %s318
        %v332 = vsel %vm315, %v331, %v330
        %v333 = vstv %s295
        %v334 = vsel %vm319, %v333, 0.0
        %v335 = vstv %s293
        %v336 = vsel %vm315, %v335, %v334
        %v337 = vsel %vm315, 1, 0
        %vm338 = vcmp.eq.s32.totalorder %v337, 1
        %v339 = vsel %vm338, %v314, 0.0
        %v340 = vsel %vm319, 1, 0
        %vm341 = vcmp.eq.s32.totalorder %v340, 1
        %v342 = vsel %vm341, %v312, 0.0
        %v343 = vadd.f32 %v339, %v342
        %vm344 = vcmp.lt.s32.totalorder %v303, 2
        %v345 = vmul.f32 %v291, 2.0
        %v346 = vsub.f32 %v345, 0.5
        %v347 = vadd.f32 %v346, %v343
        %v348 = vsel %vm344, 1, 0
        %vm349 = vcmp.eq.s32.totalorder %v348, 1
        %v350 = vsel %vm349, %v347, %v291
        %v351 = vmul.f32 %v350, %v332
        %v352 = vadd.f32 %v351, %v336
        %353 = vst [vmem:[%s220] sm:$0x3f] %v352
        %p354 = scmp.lt.s32.totalorder %s28, 1
        %s355 = scalar_select %p354, %s28, 1
        %p356 = scmp.lt.s32.totalorder %s29, 1
        %s357 = scalar_select %p356, %s29, 1
        %s358 = smul.addr %s355, 2
        %s359 = sadd.s32 %s357, %s358
        %s360 = smul.addr %s359, 8
        %s361 = scalar_lea.vmem %s4, %s360
        // Predicated region
        $region37: #{tpu_custom_call.1} parent=31 // pred_check
          %p362 = pneg %p126
        $region38: #{tpu_custom_call.1} parent=31 // pred_check_branch
          %364 = sbr.rel (%p362) target = $region40
        $region39: #{tpu_custom_call.1} parent=31 // pred_region
          _
        $region40: #{tpu_custom_call.1} parent=31 // pred_fallthru
          _
      $region32: #{tpu_custom_call.1} parent=5 // pred_fallthru
        _
      %p365 = scmp.le.s32.totalorder 2, %s19
      // Predicated region
      $region41: #{tpu_custom_call.1} parent=5 // pred_check
        %p366 = pneg %p365
      $region42: #{tpu_custom_call.1} parent=5 // pred_check_branch
        %368 = sbr.rel (%p366) target = $region44
      $region43: #{tpu_custom_call.1} parent=5 // pred_region
        %s369 = ssub.s32 %s19, 2
        // Predicated region
        $region45: #{tpu_custom_call.1} parent=43 // pred_check
          %p370 = pneg %p132
        $region46: #{tpu_custom_call.1} parent=43 // pred_check_branch
          %372 = sbr.rel (%p370) target = $region48
        $region47: #{tpu_custom_call.1} parent=43 // pred_region
          %p373 = scmp.lt.s32.totalorder %s30, 1
          %s374 = scalar_select %p373, %s30, 1
          %p375 = scmp.lt.s32.totalorder %s31, 1
          %s376 = scalar_select %p375, %s31, 1
          %s377 = smul.addr %s374, 2
          %s378 = sadd.s32 %s376, %s377
          %s379 = smul.addr %s378, 8
          %s380 = scalar_lea.vmem %s4, %s379
        $region48: #{tpu_custom_call.1} parent=43 // pred_fallthru
          _
      $region44: #{tpu_custom_call.1} parent=5 // pred_fallthru
        _
    $region6: #{tpu_custom_call.1} parent=1 // loop_footer
      %s23 = sadd.s32 1, %s19
    $region7: #{tpu_custom_call.1} parent=1 // loop_footer_branch
      %18 = sbr.rel target = $region3
    $region8: #{tpu_custom_call.1} parent=1 // loop_exit
      _
    %381 = vsyncpa [#allocation5], 1
    %s382 = scalar_lea.sflag [#allocation5], 1
    %383 = vsyncpa %s382, 1

</llo_original>
